<compile_context>
chip_gen: v6e
topology: v6e:2x2x1
jax: 0.10.0
libtpu: 0.0.40
codegen_flags: <defaults>
</compile_context>

<pallas_src>
import functools

import jax
import jax.numpy as jnp
from jax.experimental import pallas as pl
from jax.experimental.pallas import tpu as pltpu


def _sparsifier_kernel(*refs, l2_reg_strength, training):
    """One grid step: a (t_o, d*d) lane-dense slab of structures."""
    if training:
        dags_ref, pi_ref, u_ref, masked_ref, reg_ref = refs
    else:
        dags_ref, pi_ref, masked_ref, reg_ref = refs

    dags = dags_ref[...]          # (t_o, d*d) f32
    pi = pi_ref[...]              # (t_o, d*d) f32

    if training:
        # Bernoulli STE forward. Equivalent to torch's (sign(pi - u) + 1)/2 except
        # on the measure-zero event u == pi (where torch.sign would give 0.5).
        z = jnp.where(u_ref[...] < pi, 1.0, 0.0)
    else:
        z = jnp.where(pi > 0.5, 1.0, 0.0)

    masked_ref[...] = dags * z
    # Per-structure regularizer: l2 * sum_j(dag_ij * |pi_ij|)
    reg_ref[...] = l2_reg_strength * jnp.sum(
        dags * jnp.abs(pi), axis=1, keepdims=True)


def _choose_block_rows(o, n, target_bytes=1 << 20):
    """Structures per grid step so one (rows, n) f32 buffer is ~target_bytes."""
    rows = max(1, target_bytes // (n * 4))
    if rows >= o:
        return o                      # single full-extent block (always legal)
    rows = (rows // 8) * 8            # sublane-aligned partial blocks
    if rows == 0:
        rows = 8
    return min(rows, o)


def bernoulli_ste_l0_sparsifier(complete_dags, pi, uniforms=None, *,
                                l2_reg_strength, training=True,
                                block_structures=None):
    """Returns (sparsified_dags (o, d, d) f32, regularizer (o,) f32)."""
    o, d, _ = complete_dags.shape
    n = d * d

    # Lane-dense layout: last (lane) dim becomes the full flattened row.
    dags2 = complete_dags.reshape(o, n).astype(jnp.float32)
    pi2 = pi.reshape(o, n).astype(jnp.float32)

    t_o = block_structures if block_structures is not None else _choose_block_rows(o, n)
    grid = (pl.cdiv(o, t_o),)

    row_spec = pl.BlockSpec((t_o, n), lambda i: (i, 0))
    reg_spec = pl.BlockSpec((t_o, 1), lambda i: (i, 0))

    if training:
        if uniforms is None:
            raise ValueError("training=True requires precomputed uniforms")
        # torch.rand equivalent, generated outside the kernel so no TPU-only PRNG
        # primitive is needed (also runs under interpret mode).
        # TODO(synk): on real TPU hardware an in-kernel pltpu.prng_seed /
        # prng_random_bits draw per block would save one HBM input stream.
        u2 = uniforms.reshape(o, n).astype(jnp.float32)
        args = (dags2, pi2, u2)
        in_specs = [row_spec, row_spec, row_spec]
    else:
        args = (dags2, pi2)
        in_specs = [row_spec, row_spec]

    kernel = functools.partial(
        _sparsifier_kernel,
        l2_reg_strength=float(l2_reg_strength),
        training=training,
    )

    masked, reg = pl.pallas_call(
        kernel,
        out_shape=(
            jax.ShapeDtypeStruct((o, n), jnp.float32),
            jax.ShapeDtypeStruct((o, 1), jnp.float32),
        ),
        grid_spec=pltpu.PrefetchScalarGridSpec(
            num_scalar_prefetch=0,
            grid=grid,
            in_specs=in_specs,
            out_specs=[row_spec, reg_spec],
        ),
        compiler_params=pltpu.CompilerParams(
            # Structure blocks are fully independent -> shard across TCs on v7x.
            dimension_semantics=("parallel",),
            vmem_limit_bytes=32 * 1024 * 1024,
        ),
    )(*args)
    return masked.reshape(o, d, d), reg.reshape(o)


if __name__ == "__main__":
    l2_reg_strength = 0.1
    key = jax.random.PRNGKey(0)
    k1, k2, k3, k4 = jax.random.split(key, 4)

    # Case 1: small example matching the module init (pi = 0.5 * ones).
    o, d = 4, 16
    complete_dags = jax.random.bernoulli(k1, 0.5, (o, d, d)).astype(jnp.float32)
    pi = 0.5 * jnp.ones((o, d, d), dtype=jnp.float32)      # init_parameters()
    u = jax.random.uniform(k2, (o, d, d), dtype=jnp.float32)

    masked, reg = bernoulli_ste_l0_sparsifier(
        complete_dags, pi, u, l2_reg_strength=l2_reg_strength, training=True)
    masked = jax.block_until_ready(masked)
    reg = jax.block_until_ready(reg)

    assert masked.shape == (o, d, d) and reg.shape == (o,)
    z_ref = (u < pi).astype(jnp.float32)
    assert jnp.allclose(masked, complete_dags * z_ref, atol=1e-6)
    assert jnp.allclose(
        reg, l2_reg_strength * jnp.sum(complete_dags * jnp.abs(pi), axis=(1, 2)),
        atol=1e-5)

    # Eval-mode path (deterministic threshold z = pi > 0.5).
    masked_e, reg_e = bernoulli_ste_l0_sparsifier(
        complete_dags, pi, l2_reg_strength=l2_reg_strength, training=False)
    masked_e = jax.block_until_ready(masked_e)
    assert jnp.allclose(masked_e, complete_dags * (pi > 0.5).astype(jnp.float32))

    # Case 2: multi-block grid over the structure axis (blocks of 8 structures).
    o2 = 24
    dags_b = jax.random.bernoulli(k3, 0.5, (o2, d, d)).astype(jnp.float32)
    pi_b = jax.random.uniform(k4, (o2, d, d), dtype=jnp.float32)
    u_b = jax.random.uniform(jax.random.fold_in(k4, 1), (o2, d, d), dtype=jnp.float32)
    masked_b, reg_b = bernoulli_ste_l0_sparsifier(
        dags_b, pi_b, u_b, l2_reg_strength=l2_reg_strength, training=True,
        block_structures=8)
    masked_b = jax.block_until_ready(masked_b)
    reg_b = jax.block_until_ready(reg_b)
    assert jnp.allclose(masked_b, dags_b * (u_b < pi_b).astype(jnp.float32), atol=1e-6)
    assert jnp.allclose(
        reg_b, l2_reg_strength * jnp.sum(dags_b * jnp.abs(pi_b), axis=(1, 2)),
        atol=1e-5)

    print("KERNEL_OK")
</pallas_src>

<mosaic_0001>
module attributes {stable_mosaic.version = 11 : i64} {
  func.func @_sparsifier_kernel(%arg0: i32, %arg1: memref<4x256xf32, #tpu.memory_space<vmem>>, %arg2: memref<4x256xf32, #tpu.memory_space<vmem>>, %arg3: memref<4x256xf32, #tpu.memory_space<vmem>>, %arg4: memref<4x256xf32, #tpu.memory_space<vmem>>, %arg5: memref<4x1xf32, #tpu.memory_space<vmem>>) attributes {dimension_semantics = [#tpu.dimension_semantics<parallel>], iteration_bounds = array<i64: 1>, scalar_prefetch = 0 : i64, scratch_operands = 0 : i64, tpu.core_type = #tpu.core_type<tc>, window_params = [{transform_indices = @transform_0, window_bounds = array<i64: 4, 256>}, {transform_indices = @transform_1, window_bounds = array<i64: 4, 256>}, {transform_indices = @transform_2, window_bounds = array<i64: 4, 256>}, {transform_indices = @transform_3, window_bounds = array<i64: 4, 256>}, {transform_indices = @transform_4, window_bounds = array<i64: 4, 1>}]} {
    %c0 = arith.constant 0 : index
    %c0_0 = arith.constant 0 : index
    %0 = vector.load %arg1[%c0, %c0_0] : memref<4x256xf32, #tpu.memory_space<vmem>>, vector<4x256xf32>
    %c0_1 = arith.constant 0 : index
    %c0_2 = arith.constant 0 : index
    %1 = vector.load %arg2[%c0_1, %c0_2] : memref<4x256xf32, #tpu.memory_space<vmem>>, vector<4x256xf32>
    %c0_3 = arith.constant 0 : index
    %c0_4 = arith.constant 0 : index
    %2 = vector.load %arg3[%c0_3, %c0_4] : memref<4x256xf32, #tpu.memory_space<vmem>>, vector<4x256xf32>
    %3 = arith.cmpf olt, %2, %1 : vector<4x256xf32>
    %cst = arith.constant 1.000000e+00 : f32
    %cst_5 = arith.constant 0.000000e+00 : f32
    %4 = vector.broadcast %cst : f32 to vector<4x256xf32>
    %5 = vector.broadcast %cst_5 : f32 to vector<4x256xf32>
    %6 = arith.select %3, %4, %5 : vector<4x256xi1>, vector<4x256xf32>
    %7 = arith.mulf %0, %6 : vector<4x256xf32>
    %c0_6 = arith.constant 0 : index
    %c0_7 = arith.constant 0 : index
    %8 = vector.load %arg4[%c0_6, %c0_7] : memref<4x256xf32, #tpu.memory_space<vmem>>, vector<4x256xf32>
    tpu.vector_store %arg4[%c0_6, %c0_7], %7 {strides = array<i32>} : memref<4x256xf32, #tpu.memory_space<vmem>>, vector<4x256xf32>,
    %9 = math.absf %1 : vector<4x256xf32>
    %10 = arith.mulf %0, %9 : vector<4x256xf32>
    %cst_8 = arith.constant dense<0.000000e+00> : vector<4xf32>
    %11 = vector.multi_reduction <add>, %10, %cst_8 [1] : vector<4x256xf32> to vector<4xf32>
    %12 = vector.shape_cast %11 : vector<4xf32> to vector<4x1xf32>
    %cst_9 = arith.constant 1.000000e-01 : f32
    %13 = vector.broadcast %cst_9 : f32 to vector<4x1xf32>
    %14 = arith.mulf %13, %12 : vector<4x1xf32>
    %c0_10 = arith.constant 0 : index
    %c0_11 = arith.constant 0 : index
    %15 = vector.load %arg5[%c0_10, %c0_11] : memref<4x1xf32, #tpu.memory_space<vmem>>, vector<4x1xf32>
    tpu.vector_store %arg5[%c0_10, %c0_11], %14 {strides = array<i32>} : memref<4x1xf32, #tpu.memory_space<vmem>>, vector<4x1xf32>,
    return
  }
  func.func @transform_0(%arg0: i32) -> (i32, i32) {
    %c0_i32 = arith.constant 0 : i32
    %c0_i32_0 = arith.constant 0 : i32
    return %arg0, %c0_i32 : i32, i32
  }
  func.func @transform_1(%arg0: i32) -> (i32, i32) {
    %c0_i32 = arith.constant 0 : i32
    %c0_i32_0 = arith.constant 0 : i32
    return %arg0, %c0_i32 : i32, i32
  }
  func.func @transform_2(%arg0: i32) -> (i32, i32) {
    %c0_i32 = arith.constant 0 : i32
    %c0_i32_0 = arith.constant 0 : i32
    return %arg0, %c0_i32 : i32, i32
  }
  func.func @transform_3(%arg0: i32) -> (i32, i32) {
    %c0_i32 = arith.constant 0 : i32
    %c0_i32_0 = arith.constant 0 : i32
    return %arg0, %c0_i32 : i32, i32
  }
  func.func @transform_4(%arg0: i32) -> (i32, i32) {
    %c0_i32 = arith.constant 0 : i32
    %c0_i32_0 = arith.constant 0 : i32
    return %arg0, %c0_i32 : i32, i32
  }
}

</mosaic_0001>

<llo_original>
// kernel: tpu_custom_call.1
$region0: #{tpu_custom_call.1}
  #allocation0 [shape = 'u32[]', space=smem, size = 0x4, offset = 0x4, fixed_abs, tag = 'smem constant byte address 0x4 - core index']
  #allocation1 [shape = 'u32[144,128]{1,0:T(1,128)}', space=vmem, size = 0x12000, scoped, tag = 'internal scratch']
  %s0 = inlined_call_operand.hbm [shape: f32[4,256], index: 0, kind: input, shape index: {}]
  %s1 = inlined_call_operand.hbm [shape: f32[4,256], index: 1, kind: input, shape index: {}]
  %s2 = inlined_call_operand.hbm [shape: f32[4,256], index: 2, kind: input, shape index: {}]
  %s3 = inlined_call_operand.hbm [shape: f32[4,256], index: 3, kind: output, shape index: {0}]
  %s4 = inlined_call_operand.vmem [shape: f32[4,1], index: 4, kind: output, shape index: {1}]
  %5 = xla_tuple %s3, %s4
  %s6 = sld [smem:[#allocation0]]
  $region42: #{tpu_custom_call.1} parent=0
    _
  %s8 = ssub.s32 1, %s6
  %s9 = scalar_select 0, %s8, %s6
  $region1: #{tpu_custom_call.1} parent=0
    #allocation2 [shape = 'u8[4096]{0}', space=vmem, size = 0x1000, scoped, tag = 'input window, operand 0, single buffered']
    #allocation3 [shape = 's32[1]{0}', space=sflag, size = 0x4, scoped, tag = 'scoped memory for tpu_custom_call.1']
    #allocation4 [shape = 's32[1]{0}', space=sflag, size = 0x4, scoped, tag = 'scoped memory for tpu_custom_call.1']
    #allocation5 [shape = 'u8[4096]{0}', space=vmem, size = 0x1000, scoped, tag = 'input window, operand 1, single buffered']
    #allocation6 [shape = 's32[1]{0}', space=sflag, size = 0x4, scoped, tag = 'scoped memory for tpu_custom_call.1']
    #allocation7 [shape = 'u8[4096]{0}', space=vmem, size = 0x1000, scoped, tag = 'input window, operand 2, single buffered']
    #allocation8 [shape = 'u8[4096]{0}', space=vmem, size = 0x1000, scoped, tag = 'output window, operand 0, single buffered']
    %10 = vsyncpa [#allocation3], 0
    %11 = vsyncpa [#allocation6], 0
    %12 = vsyncpa [#allocation4], 0
    // Predicated region
    $region2: #{tpu_custom_call.1} parent=1 // pred_check
      _
    $region3: #{tpu_custom_call.1} parent=1 // pred_check_branch
      %14 = sbr.rel (0) target = $region5
    $region4: #{tpu_custom_call.1} parent=1 // pred_region
      %s16 = ssub.s32 128, 128
      %17 = vsyncadd [#allocation3], %s16
      %s19 = sshll.u32 [#allocation2], 4
      %s20 = int_to_ptr.vmem [resolvable:$true] %s19
      %22 = dma.hbm_to_vmem [thread:$0]  %s0, 128, %s20, [#allocation3]
    $region5: #{tpu_custom_call.1} parent=1 // pred_fallthru
      _
    // Predicated region
    $region6: #{tpu_custom_call.1} parent=1 // pred_check
      _
    $region7: #{tpu_custom_call.1} parent=1 // pred_check_branch
      %24 = sbr.rel (0) target = $region9
    $region8: #{tpu_custom_call.1} parent=1 // pred_region
      %s26 = ssub.s32 128, 128
      %27 = vsyncadd [#allocation6], %s26
      %s29 = sshll.u32 [#allocation5], 4
      %s30 = int_to_ptr.vmem [resolvable:$true] %s29
      %32 = dma.hbm_to_vmem [thread:$0]  %s1, 128, %s30, [#allocation6]
    $region9: #{tpu_custom_call.1} parent=1 // pred_fallthru
      _
    // Predicated region
    $region10: #{tpu_custom_call.1} parent=1 // pred_check
      _
    $region11: #{tpu_custom_call.1} parent=1 // pred_check_branch
      %34 = sbr.rel (0) target = $region13
    $region12: #{tpu_custom_call.1} parent=1 // pred_region
      %s36 = ssub.s32 128, 128
      %37 = vsyncadd [#allocation6], %s36
      %s39 = sshll.u32 [#allocation7], 4
      %s40 = int_to_ptr.vmem [resolvable:$true] %s39
      %42 = dma.hbm_to_vmem [thread:$0]  %s2, 128, %s40, [#allocation6]
    $region13: #{tpu_custom_call.1} parent=1 // pred_fallthru
      _
    // Predicated region
    $region14: #{tpu_custom_call.1} parent=1 // pred_check
      _
    $region15: #{tpu_custom_call.1} parent=1 // pred_check_branch
      %44 = sbr.rel (0) target = $region17
    $region16: #{tpu_custom_call.1} parent=1 // pred_region
      %45 = dma.done [#allocation3], 128
    $region17: #{tpu_custom_call.1} parent=1 // pred_fallthru
      _
    // Predicated region
    $region18: #{tpu_custom_call.1} parent=1 // pred_check
      _
    $region19: #{tpu_custom_call.1} parent=1 // pred_check_branch
      %47 = sbr.rel (0) target = $region21
    $region20: #{tpu_custom_call.1} parent=1 // pred_region
      %48 = dma.done [#allocation6], 128
    $region21: #{tpu_custom_call.1} parent=1 // pred_fallthru
      _
    // Predicated region
    $region22: #{tpu_custom_call.1} parent=1 // pred_check
      _
    $region23: #{tpu_custom_call.1} parent=1 // pred_check_branch
      %50 = sbr.rel (0) target = $region25
    $region24: #{tpu_custom_call.1} parent=1 // pred_region
      %51 = dma.done [#allocation6], 128
    $region25: #{tpu_custom_call.1} parent=1 // pred_fallthru
      _
    %v52 = vld [vmem:[#allocation2] sm:$0xff]
    %v53 = vld [vmem:[#allocation5] sm:$0xff]
    %v54 = vld [vmem:[#allocation7] sm:$0xff]
    %vm55 = vcmp.lt.f32.partialorder %v54, %v53
    %v56 = vsel %vm55, 1.0, 0.0
    %v57 = vmul.f32 %v52, %v56
    %58 = vst [vmem:[#allocation8] sm:$0xff] %v57
    %v59 = vand.u32 2147483647, %v53
    %v60 = vmul.f32 %v52, %v59
    %v62 = vcombine.high %v60, %v60
    %vm64 = vcmask 1043456
    %v65 = vsel %vm64, %v60, 0.0
    %v66 = vsel %vm64, %v62, 0.0
    %v67 = vadd.f32 %v65, %v66
    %68 = vadd.xlane.f32.xlu0 %v67
    %v69 = vpop.xlane.xlu0 %68
    %v70 = vmul.f32 %v69, 0.1
    %vm71 = vcmask 3072
    %72 = vst.msk [vmem:[%s4] sm:$0xf] %vm71, %v70
    // Predicated region
    $region26: #{tpu_custom_call.1} parent=1 // pred_check
      _
    $region27: #{tpu_custom_call.1} parent=1 // pred_check_branch
      %74 = sbr.rel (0) target = $region29
    $region28: #{tpu_custom_call.1} parent=1 // pred_region
      %s76 = ssub.s32 128, 128
      %77 = vsyncadd [#allocation4], %s76
      %s79 = sshll.u32 [#allocation8], 4
      %s80 = int_to_ptr.vmem [resolvable:$true] %s79
      %82 = dma.vmem_to_hbm [thread:$0]  %s80, 128, %s3, [#allocation4]
    $region29: #{tpu_custom_call.1} parent=1 // pred_fallthru
      _
    // Predicated region
    $region30: #{tpu_custom_call.1} parent=1 // pred_check
      _
    $region31: #{tpu_custom_call.1} parent=1 // pred_check_branch
      %84 = sbr.rel (0) target = $region33
    $region32: #{tpu_custom_call.1} parent=1 // pred_region
      _
    $region33: #{tpu_custom_call.1} parent=1 // pred_fallthru
      _
    // Predicated region
    $region34: #{tpu_custom_call.1} parent=1 // pred_check
      _
    $region35: #{tpu_custom_call.1} parent=1 // pred_check_branch
      %86 = sbr.rel (0) target = $region37
    $region36: #{tpu_custom_call.1} parent=1 // pred_region
      %87 = dma.done [#allocation4], 128
    $region37: #{tpu_custom_call.1} parent=1 // pred_fallthru
      _
    // Predicated region
    $region38: #{tpu_custom_call.1} parent=1 // pred_check
      _
    $region39: #{tpu_custom_call.1} parent=1 // pred_check_branch
      %89 = sbr.rel (0) target = $region41
    $region40: #{tpu_custom_call.1} parent=1 // pred_region
      _
    $region41: #{tpu_custom_call.1} parent=1 // pred_fallthru
      _
    %90 = vsyncpa [#allocation3], 1
    %91 = vsyncpa [#allocation6], 1
    %92 = vsyncpa [#allocation4], 1

</llo_original>
